<compile_context>
chip_gen: v6e
topology: v6e:2x2x1
jax: 0.10.0
libtpu: 0.0.40
codegen_flags: <defaults>
</compile_context>

<pallas_src>
import jax
import jax.numpy as jnp
from jax import lax
from jax.experimental import pallas as pl
from jax.experimental.pallas import tpu as pltpu


def bahdanau_attn_kernel(h_ref, w_ref, b_ref, o_ref):
    """One grid step == TB batch elements; full (TB, S, D) slab in VMEM."""
    h = h_ref[...]                           # (TB, S, D), input dtype (no f32 copy)
    w = w_ref[...]                           # (1, D), f32  -> broadcasts as (1, 1, D)
    bias = b_ref[0, 0]                       # scalar bias from SMEM

    # scores[b, s] = sum_d h[b, s, d] * w[d]  -> (TB, S), S on the lane axis.
    # h promotes to f32 per-op against the f32 weight row (no full-tile cast).
    scores = jnp.sum(h * w, axis=-1)                           # (TB, S), f32
    logits = jnp.tanh(scores + bias)                           # (TB, S)  (EUP tanh)

    # Online-free softmax over the sequence axis (torch dim=1) == lane reduce.
    # Normalization is deferred to the (TB, D) output (fewer VPU ops than
    # normalizing the (TB, S) alpha when S is the larger axis, same math).
    m = jnp.max(logits, axis=-1, keepdims=True)                # (TB, 1)
    e = jnp.exp(logits - m)                                    # (TB, S), f32
    den = jnp.sum(e, axis=-1, keepdims=True)                   # (TB, 1), f32

    # num[b, d] = sum_s e[b, s] * h[b, s, d]; e(f32) * h promotes per-op.
    num = jnp.sum(e[:, :, None] * h, axis=1)                   # (TB, D), f32
    o_ref[...] = (num / den).astype(o_ref.dtype)


def _pick_block_b(B, S, D, itemsize, target_bytes=4 << 20):
    """Batch-block size: ~2-8 MB h tiles (HBM-roofline friendly), output block
    sublane-full (multiple of 8), never more than B."""
    if B <= 8:
        return B                               # block == full batch dim (always legal)
    tb = target_bytes // max(1, S * D * itemsize)
    tb = max(8, min(int(tb), B))
    return (tb // 8) * 8


def bahdanau_attention(h, w, b, *, block_b=None):
    """h: (B, S, D); w: (D, O) (transpose of torch's (O, D)); b: (O,) or (1, O).
    Returns (B, D).  Canonical Bahdanau: output_size O == 1."""
    B, S, D = h.shape
    w = jnp.asarray(w)
    b = jnp.asarray(b)
    O = w.shape[-1]
    # TODO(synk): output_size > 1 (torch broadcast case O == D) would need a
    # (TB, S, O) score layout with a sublane-axis softmax; not implemented here.
    assert O == 1, "only output_size == 1 (canonical Bahdanau) is implemented"
    # TODO(synk): very long sequences (block_b*S*D*itemsize >> VMEM) would need a
    # flash-style online-softmax tile over S; unnecessary at these sizes.

    if block_b is None:
        block_b = _pick_block_b(B, S, D, h.dtype.itemsize)
    grid_b = pl.cdiv(B, block_b)

    w_row = w.reshape(1, D).astype(jnp.float32)     # lane-dense shared weight row
    b_sc = b.reshape(1, 1).astype(jnp.float32)      # scalar bias -> SMEM

    # VMEM budget: double-buffered h tile + f32 intermediates + headroom,
    # clamped under the v7x 64 MiB per-TC capacity.
    h_tile_bytes = block_b * S * D * h.dtype.itemsize
    vmem_limit = min(48 * 1024 * 1024,
                     max(8 * 1024 * 1024, 6 * h_tile_bytes + (2 << 20)))

    return pl.pallas_call(
        bahdanau_attn_kernel,
        out_shape=jax.ShapeDtypeStruct((B, D), h.dtype),
        grid_spec=pltpu.PrefetchScalarGridSpec(
            num_scalar_prefetch=0,
            grid=(grid_b,),
            in_specs=[
                pl.BlockSpec((block_b, S, D), lambda i: (i, 0, 0)),   # batch-blocked h
                pl.BlockSpec((1, D), lambda i: (0, 0)),               # shared weight row
                pl.BlockSpec(memory_space=pltpu.MemorySpace.SMEM),    # scalar bias
            ],
            out_specs=pl.BlockSpec((block_b, D), lambda i: (i, 0)),   # lane-dense output slab
        ),
        compiler_params=pltpu.CompilerParams(
            dimension_semantics=("parallel",),        # shard batch grid across TCs (v7x megacore)
            vmem_limit_bytes=vmem_limit,
        ),
    )(h, w_row, b_sc)


def reference(h, w, b):
    a = jnp.tanh(jnp.einsum("bsd,do->bso", h, w,
                            precision=lax.Precision.HIGHEST) + b)   # (B, S, O)
    alpha = jax.nn.softmax(a, axis=1)                               # softmax over sequence
    return jnp.sum(alpha * h, axis=1)                               # (B, D)


if __name__ == "__main__":
    # Small, tile-friendly shapes consistent with the module:
    # batch=16, seq=16, input_size=128, output_size=1 (canonical Bahdanau).
    B, S, D, O = 16, 16, 128, 1

    key = jax.random.PRNGKey(0)
    k_h, k_w, k_b = jax.random.split(key, 3)

    h = jax.random.normal(k_h, (B, S, D), dtype=jnp.float32)
    w = jax.random.normal(k_w, (D, O), dtype=jnp.float32) * 0.1   # nn.Linear weight^T
    b = jax.random.normal(k_b, (O,), dtype=jnp.float32) * 0.1     # nn.Linear bias

    # block_b=8 -> grid of 2 steps (keeps both v7x TensorCores busy; no-op on v5e/v6e).
    out = jax.block_until_ready(bahdanau_attention(h, w, b, block_b=8))
    ref = jax.block_until_ready(reference(h, w, b))

    assert out.shape == (B, D)
    assert jnp.allclose(out, ref, atol=1e-5, rtol=1e-5), float(jnp.max(jnp.abs(out - ref)))
    print("KERNEL_OK")
</pallas_src>

<mosaic_0001>
module attributes {stable_mosaic.version = 11 : i64} {
  func.func @bahdanau_attn_kernel(%arg0: i32, %arg1: memref<8x16x128xf32, #tpu.memory_space<vmem>>, %arg2: memref<1x128xf32, #tpu.memory_space<vmem>>, %arg3: memref<1x1xf32, #tpu.memory_space<smem>>, %arg4: memref<8x128xf32, #tpu.memory_space<vmem>>) attributes {dimension_semantics = [#tpu.dimension_semantics<parallel>], iteration_bounds = array<i64: 2>, scalar_prefetch = 0 : i64, scratch_operands = 0 : i64, tpu.core_type = #tpu.core_type<tc>, window_params = [{transform_indices = @transform_0, window_bounds = array<i64: 8, 16, 128>}, {pipeline_mode = #tpu.pipeline_mode<synchronous>, transform_indices = @transform_1, window_bounds = array<i64: 1, 128>}, {transform_indices = @transform_2, window_bounds = array<i64: 1, 1>}, {transform_indices = @transform_3, window_bounds = array<i64: 8, 128>}]} {
    %c0 = arith.constant 0 : index
    %c0_0 = arith.constant 0 : index
    %c0_1 = arith.constant 0 : index
    %0 = vector.load %arg1[%c0, %c0_0, %c0_1] : memref<8x16x128xf32, #tpu.memory_space<vmem>>, vector<8x16x128xf32>
    %c0_2 = arith.constant 0 : index
    %c0_3 = arith.constant 0 : index
    %1 = vector.load %arg2[%c0_2, %c0_3] : memref<1x128xf32, #tpu.memory_space<vmem>>, vector<1x128xf32>
    %c0_4 = arith.constant 0 : index
    %c0_5 = arith.constant 0 : index
    %2 = memref.load %arg3[%c0_4, %c0_5] : memref<1x1xf32, #tpu.memory_space<smem>>
    %3 = vector.shape_cast %1 : vector<1x128xf32> to vector<1x1x128xf32>
    %4 = vector.broadcast %3 : vector<1x1x128xf32> to vector<8x16x128xf32>
    %5 = arith.mulf %0, %4 : vector<8x16x128xf32>
    %cst = arith.constant dense<0.000000e+00> : vector<8x16xf32>
    %6 = vector.multi_reduction <add>, %5, %cst [2] : vector<8x16x128xf32> to vector<8x16xf32>
    %7 = vector.broadcast %2 : f32 to vector<8x16xf32>
    %8 = arith.addf %6, %7 : vector<8x16xf32>
    %9 = math.tanh %8 : vector<8x16xf32>
    %cst_6 = arith.constant dense<0xFF800000> : vector<8xf32>
    %10 = vector.multi_reduction <maximumf>, %9, %cst_6 [1] : vector<8x16xf32> to vector<8xf32>
    %11 = vector.shape_cast %10 : vector<8xf32> to vector<8x1xf32>
    %12 = vector.broadcast %11 : vector<8x1xf32> to vector<8x16xf32>
    %13 = arith.subf %9, %12 : vector<8x16xf32>
    %14 = math.exp %13 : vector<8x16xf32>
    %cst_7 = arith.constant dense<0.000000e+00> : vector<8xf32>
    %15 = vector.multi_reduction <add>, %14, %cst_7 [1] : vector<8x16xf32> to vector<8xf32>
    %16 = vector.shape_cast %15 : vector<8xf32> to vector<8x1xf32>
    %17 = vector.shape_cast %14 : vector<8x16xf32> to vector<8x16x1xf32>
    %18 = vector.broadcast %17 : vector<8x16x1xf32> to vector<8x16x128xf32>
    %19 = arith.mulf %18, %0 : vector<8x16x128xf32>
    %cst_8 = arith.constant dense<0.000000e+00> : vector<8x128xf32>
    %20 = vector.multi_reduction <add>, %19, %cst_8 [1] : vector<8x16x128xf32> to vector<8x128xf32>
    %21 = vector.broadcast %16 : vector<8x1xf32> to vector<8x128xf32>
    %22 = arith.divf %20, %21 : vector<8x128xf32>
    %c0_9 = arith.constant 0 : index
    %c0_10 = arith.constant 0 : index
    %23 = vector.load %arg4[%c0_9, %c0_10] : memref<8x128xf32, #tpu.memory_space<vmem>>, vector<8x128xf32>
    tpu.vector_store %arg4[%c0_9, %c0_10], %22 {strides = array<i32>} : memref<8x128xf32, #tpu.memory_space<vmem>>, vector<8x128xf32>,
    return
  }
  func.func @transform_0(%arg0: i32) -> (i32, i32, i32) {
    %c0_i32 = arith.constant 0 : i32
    %c0_i32_0 = arith.constant 0 : i32
    %c0_i32_1 = arith.constant 0 : i32
    return %arg0, %c0_i32, %c0_i32_0 : i32, i32, i32
  }
  func.func @transform_1(%arg0: i32) -> (i32, i32) {
    %c0_i32 = arith.constant 0 : i32
    %c0_i32_0 = arith.constant 0 : i32
    %c0_i32_1 = arith.constant 0 : i32
    return %c0_i32, %c0_i32_0 : i32, i32
  }
  func.func @transform_2(%arg0: i32) -> (i32, i32) {
    %c0_i32 = arith.constant 0 : i32
    %c0_i32_0 = arith.constant 0 : i32
    %c0_i32_1 = arith.constant 0 : i32
    return %c0_i32, %c0_i32_0 : i32, i32
  }
  func.func @transform_3(%arg0: i32) -> (i32, i32) {
    %c0_i32 = arith.constant 0 : i32
    %c0_i32_0 = arith.constant 0 : i32
    return %arg0, %c0_i32 : i32, i32
  }
}

</mosaic_0001>

<llo_original>
// kernel: tpu_custom_call.1
$region0: #{tpu_custom_call.1}
  #allocation0 [shape = 'u32[]', space=smem, size = 0x4, offset = 0x4, fixed_abs, tag = 'smem constant byte address 0x4 - core index']
  #allocation1 [shape = 'u32[144,128]{1,0:T(1,128)}', space=vmem, size = 0x12000, scoped, tag = 'internal scratch']
  #allocation2 [shape = 'f32[1,1]{1,0:T(1,128)S(6)}', space=smem, size = 0x200, scoped, tag = 'scoped memory for tpu_custom_call.1']
  %s0 = inlined_call_operand.hbm [shape: f32[16,16,128], index: 0, kind: input, shape index: {}]
  %s1 = inlined_call_operand.vmem [shape: f32[1,128], index: 1, kind: input, shape index: {}]
  %s2 = inlined_call_operand.<no memory space> [shape: f32[1,1], index: 2, kind: input, shape index: {}]
  %s3 = inlined_call_operand.hbm [shape: f32[16,128], index: 3, kind: output, shape index: {}]
  %s4 = sld [smem:[#allocation0]]
  $region49: #{tpu_custom_call.1} parent=0
    _
  %s6 = ssub.s32 1, %s4
  %s7 = scalar_select 0, %s6, %s4
  %8 = sst [smem:[#allocation2]] %s2
  $region1: #{tpu_custom_call.1} parent=0
    #allocation3 [shape = 'u8[131072]{0}', space=vmem, size = 0x20000, scoped, tag = 'input window, operand 0']
    #allocation4 [shape = 's32[2]{0}', space=sflag, size = 0x8, scoped, tag = 'scoped memory for tpu_custom_call.1']
    #allocation5 [shape = 's32[2]{0}', space=sflag, size = 0x8, scoped, tag = 'scoped memory for tpu_custom_call.1']
    #allocation6 [shape = 'u8[8192]{0}', space=vmem, size = 0x2000, scoped, tag = 'output window, operand 0']
    %9 = vsyncpa [#allocation4], 0
    %s10 = scalar_lea.sflag [#allocation4], 1
    %11 = vsyncpa %s10, 0
    %12 = vsyncpa [#allocation5], 0
    %s13 = scalar_lea.sflag [#allocation5], 1
    %14 = vsyncpa %s13, 0
    loop: start=0, step=1, limit=4
    $region2: #{tpu_custom_call.1} parent=1 // loop_pre_header
      _
    $region3: #{tpu_custom_call.1} parent=1 // loop_header
      %s16 = sphi 0, %s20
      %p17 = scmp.ge.s32.totalorder %s16, 4
      %s26 = sphi 0, %s28
      %s29 = sphi 0, %s26
      %s30 = sphi 0, %s29
      %s46 = sphi 0, %s30
      %s50 = sphi 0, %s50
      %s52 = sphi 0, %s50
      %s53 = sphi 0, %s52
      %s67 = sphi 0, %s53
      %s71 = sphi 0, %s71
      %s73 = sphi 0, %s71
      %s74 = sphi 0, %s73
      %s88 = sphi 0, %s74
      %s94 = sphi 0, %s96
      %s97 = sphi 0, %s94
      %s98 = sphi 0, %s97
      %s114 = sphi 0, %s98
    $region4: #{tpu_custom_call.1} parent=1 // loop_header_branch
      %19 = sbr.rel (%p17) target = $region8
    $region5: #{tpu_custom_call.1} parent=1 // loop_body
      %s21 = ssub.s32 %s16, 1
      %s22 = ssub.s32 %s16, 2
      %s23 = sadd.s32 %s16, 1
      %s24 = ssub.s32 %s16, %s23
      %p25 = scmp.eq.s32.totalorder %s24, 0
      %s27 = sadd.s32 %s26, 1
      %s28 = scalar_select %p25, %s26, %s27
      %p31 = pneg %p25
      %p32 = scmp.eq.s32.totalorder %s16, 1
      %p33 = por %p31, %p32
      %p34 = scmp.ne.s32.totalorder %s26, %s29
      %p35 = scmp.eq.s32.totalorder %s16, 0
      %p36 = por %p34, %p35
      %p37 = scmp.ne.s32.totalorder %s26, %s29
      %p38 = scmp.eq.s32.totalorder %s21, 1
      %p39 = por %p37, %p38
      %p40 = scmp.ne.s32.totalorder %s29, %s30
      %p41 = scmp.eq.s32.totalorder %s21, 0
      %p42 = por %p40, %p41
      %p43 = scmp.ne.s32.totalorder %s29, %s30
      %p44 = scmp.eq.s32.totalorder %s22, 1
      %p45 = por %p43, %p44
      %p47 = scmp.ne.s32.totalorder %s30, %s46
      %p48 = scmp.eq.s32.totalorder %s22, 0
      %p49 = por %p47, %p48
      %s51 = sadd.s32 %s50, 1
      %p54 = scmp.eq.s32.totalorder %s16, 1
      %p55 = scmp.ne.s32.totalorder %s50, %s52
      %p56 = scmp.eq.s32.totalorder %s16, 0
      %p57 = por %p55, %p56
      %p58 = scmp.ne.s32.totalorder %s50, %s52
      %p59 = scmp.eq.s32.totalorder %s21, 1
      %p60 = por %p58, %p59
      %p61 = scmp.ne.s32.totalorder %s52, %s53
      %p62 = scmp.eq.s32.totalorder %s21, 0
      %p63 = por %p61, %p62
      %p64 = scmp.ne.s32.totalorder %s52, %s53
      %p65 = scmp.eq.s32.totalorder %s22, 1
      %p66 = por %p64, %p65
      %p68 = scmp.ne.s32.totalorder %s53, %s67
      %p69 = scmp.eq.s32.totalorder %s22, 0
      %p70 = por %p68, %p69
      %s72 = sadd.s32 %s71, 1
      %p75 = scmp.eq.s32.totalorder %s16, 1
      %p76 = scmp.ne.s32.totalorder %s71, %s73
      %p77 = scmp.eq.s32.totalorder %s16, 0
      %p78 = por %p76, %p77
      %p79 = scmp.ne.s32.totalorder %s71, %s73
      %p80 = scmp.eq.s32.totalorder %s21, 1
      %p81 = por %p79, %p80
      %p82 = scmp.ne.s32.totalorder %s73, %s74
      %p83 = scmp.eq.s32.totalorder %s21, 0
      %p84 = por %p82, %p83
      %p85 = scmp.ne.s32.totalorder %s73, %s74
      %p86 = scmp.eq.s32.totalorder %s22, 1
      %p87 = por %p85, %p86
      %p89 = scmp.ne.s32.totalorder %s74, %s88
      %p90 = scmp.eq.s32.totalorder %s22, 0
      %p91 = por %p89, %p90
      %s92 = ssub.s32 %s16, %s23
      %p93 = scmp.eq.s32.totalorder %s92, 0
      %s95 = sadd.s32 %s94, 1
      %s96 = scalar_select %p93, %s94, %s95
      %p99 = pneg %p93
      %p100 = scmp.eq.s32.totalorder %s16, 1
      %p101 = por %p99, %p100
      %p102 = scmp.ne.s32.totalorder %s94, %s97
      %p103 = scmp.eq.s32.totalorder %s16, 0
      %p104 = por %p102, %p103
      %p105 = scmp.ne.s32.totalorder %s94, %s97
      %p106 = scmp.eq.s32.totalorder %s21, 1
      %p107 = por %p105, %p106
      %p108 = scmp.ne.s32.totalorder %s97, %s98
      %p109 = scmp.eq.s32.totalorder %s21, 0
      %p110 = por %p108, %p109
      %p111 = scmp.ne.s32.totalorder %s97, %s98
      %p112 = scmp.eq.s32.totalorder %s22, 1
      %p113 = por %p111, %p112
      %p115 = scmp.ne.s32.totalorder %s98, %s114
      %p116 = scmp.eq.s32.totalorder %s22, 0
      %p117 = por %p115, %p116
      %p118 = scmp.le.s32.totalorder 1, %s16
      %p119 = scmp.lt.s32.totalorder %s16, 3
      %p120 = pnand %p118, %p119
      %p121 = pneg %p120
      // Predicated region
      $region9: #{tpu_custom_call.1} parent=5 // pred_check
        _
      $region10: #{tpu_custom_call.1} parent=5 // pred_check_branch
        %123 = sbr.rel (%p120) target = $region12
      $region11: #{tpu_custom_call.1} parent=5 // pred_region
        %s124 = ssub.s32 %s16, 1
        // Predicated region
        $region13: #{tpu_custom_call.1} parent=11 // pred_check
          %p125 = pneg %p63
        $region14: #{tpu_custom_call.1} parent=11 // pred_check_branch
          %127 = sbr.rel (%p125) target = $region16
        $region15: #{tpu_custom_call.1} parent=11 // pred_region
          _
        $region16: #{tpu_custom_call.1} parent=11 // pred_fallthru
          _
        // Predicated region
        $region17: #{tpu_custom_call.1} parent=11 // pred_check
          %p128 = pneg %p84
        $region18: #{tpu_custom_call.1} parent=11 // pred_check_branch
          %130 = sbr.rel (%p128) target = $region20
        $region19: #{tpu_custom_call.1} parent=11 // pred_region
          _
        $region20: #{tpu_custom_call.1} parent=11 // pred_fallthru
          _
      $region12: #{tpu_custom_call.1} parent=5 // pred_fallthru
        _
      %p131 = scmp.lt.s32.totalorder %s16, 2
      // Predicated region
      $region21: #{tpu_custom_call.1} parent=5 // pred_check
        %p132 = pneg %p131
      $region22: #{tpu_custom_call.1} parent=5 // pred_check_branch
        %134 = sbr.rel (%p132) target = $region24
      $region23: #{tpu_custom_call.1} parent=5 // pred_region
        // Predicated region
        $region25: #{tpu_custom_call.1} parent=23 // pred_check
          %p135 = pneg %p36
        $region26: #{tpu_custom_call.1} parent=23 // pred_check_branch
          %137 = sbr.rel (%p135) target = $region28
        $region27: #{tpu_custom_call.1} parent=23 // pred_region
          %s138 = sand.u32 %s26, 1
          %s139 = scalar_lea.sflag [#allocation4], %s138
          %s140 = sand.u32 %s26, 1
          %s141 = smul.addr %s140, 128
          %s142 = scalar_lea.vmem [#allocation3], %s141
          %s143 = smul.u32 8, %s16
          %s145 = ssub.s32 2048, 2048
          %146 = vsyncadd %s139, %s145
          %s147 = smul.addr %s143, 2
          %s148 = smul.addr %s147, 128
          %s149 = scalar_lea.hbm %s0, %s148
          %s150 = sshll.u32 %s142, 4
          %s151 = int_to_ptr.vmem [resolvable:$true] %s150
          %156 = dma.hbm_to_vmem [thread:$0]  %s149, 2048, %s151, %s139, 128, 128, 8
        $region28: #{tpu_custom_call.1} parent=23 // pred_fallthru
          _
      $region24: #{tpu_custom_call.1} parent=5 // pred_fallthru
        _
      %p157 = scmp.le.s32.totalorder 1, %s16
      %p158 = scmp.lt.s32.totalorder %s16, 3
      %p159 = pnand %p157, %p158
      %p160 = pneg %p159
      // Predicated region
      $region29: #{tpu_custom_call.1} parent=5 // pred_check
        _
      $region30: #{tpu_custom_call.1} parent=5 // pred_check_branch
        %162 = sbr.rel (%p159) target = $region32
      $region31: #{tpu_custom_call.1} parent=5 // pred_region
        %s163 = ssub.s32 %s16, 1
        %s164 = sand.u32 %s29, 1
        %s165 = scalar_lea.sflag [#allocation4], %s164
        %s166 = sand.u32 %s29, 1
        %s167 = smul.addr %s166, 128
        %s168 = scalar_lea.vmem [#allocation3], %s167
        // Predicated region
        $region33: #{tpu_custom_call.1} parent=31 // pred_check
          %p169 = pneg %p42
        $region34: #{tpu_custom_call.1} parent=31 // pred_check_branch
          %171 = sbr.rel (%p169) target = $region36
        $region35: #{tpu_custom_call.1} parent=31 // pred_region
          %172 = dma.done %s165, 2048
        $region36: #{tpu_custom_call.1} parent=31 // pred_fallthru
          _
        %s173 = sand.u32 %s29, 1
        %s174 = scalar_lea.sflag [#allocation4], %s173
        %s175 = sand.u32 %s29, 1
        %s176 = smul.addr %s175, 128
        %s177 = scalar_lea.vmem [#allocation3], %s176
        %p178 = pneg %p42
        %p179 = pneg %p39
        %p180 = pneg %p63
        %p181 = pneg %p60
        %p182 = pneg %p84
        %p183 = pneg %p81
        %p184 = pneg %p110
        %p185 = pneg %p107
        %s186 = sand.u32 %s97, 1
        %s187 = scalar_lea.sflag [#allocation5], %s186
        %s188 = sand.u32 %s97, 1
        %s189 = smul.addr %s188, 8
        %s190 = scalar_lea.vmem [#allocation6], %s189
        %s191 = smul.u32 8, %s21
        %v192 = vld [vmem:[%s168] sm:$0xff]
        %v193 = vld [vmem:[%s168 + $0x8] sm:$0xff]
        %v194 = vld [vmem:[%s168 + $0x10] sm:$0xff]
        %v195 = vld [vmem:[%s168 + $0x18] sm:$0xff]
        %v196 = vld [vmem:[%s168 + $0x20] sm:$0xff]
        %v197 = vld [vmem:[%s168 + $0x28] sm:$0xff]
        %v198 = vld [vmem:[%s168 + $0x30] sm:$0xff]
        %v199 = vld [vmem:[%s168 + $0x38] sm:$0xff]
        %v200 = vld [vmem:[%s168 + $0x40] sm:$0xff]
        %v201 = vld [vmem:[%s168 + $0x48] sm:$0xff]
        %v202 = vld [vmem:[%s168 + $0x50] sm:$0xff]
        %v203 = vld [vmem:[%s168 + $0x58] sm:$0xff]
        %v204 = vld [vmem:[%s168 + $0x60] sm:$0xff]
        %v205 = vld [vmem:[%s168 + $0x68] sm:$0xff]
        %v206 = vld [vmem:[%s168 + $0x70] sm:$0xff]
        %v207 = vld [vmem:[%s168 + $0x78] sm:$0xff]
        %v208 = vld [vmem:[%s1] sm:$0x1]
        %s209 = sld [smem:[#allocation2]]
        %v211 = vlaneseq
        %v212 = vshrl.u32 %v211, 7
        %v213 = vsub.s32 0, %v212
        %v214 = vrot.slane %v208, %v213
        %v216 = vmul.f32 %v192, %v214
        %v217 = vmul.f32 %v193, %v214
        %v218 = vmul.f32 %v194, %v214
        %v219 = vmul.f32 %v195, %v214
        %v220 = vmul.f32 %v196, %v214
        %v221 = vmul.f32 %v197, %v214
        %v222 = vmul.f32 %v198, %v214
        %v223 = vmul.f32 %v199, %v214
        %v224 = vmul.f32 %v200, %v214
        %v225 = vmul.f32 %v201, %v214
        %v226 = vmul.f32 %v202, %v214
        %v227 = vmul.f32 %v203, %v214
        %v228 = vmul.f32 %v204, %v214
        %v229 = vmul.f32 %v205, %v214
        %v230 = vmul.f32 %v206, %v214
        %v231 = vmul.f32 %v207, %v214
        %232 = vadd.xlane.f32.xlu0 %v216
        %v233 = vpop.xlane.xlu0 %232
        %234 = vadd.xlane.f32.xlu0 %v217
        %v235 = vpop.xlane.xlu0 %234
        %236 = vadd.xlane.f32.xlu0 %v218
        %v237 = vpop.xlane.xlu0 %236
        %238 = vadd.xlane.f32.xlu0 %v219
        %v239 = vpop.xlane.xlu0 %238
        %240 = vadd.xlane.f32.xlu0 %v220
        %v241 = vpop.xlane.xlu0 %240
        %242 = vadd.xlane.f32.xlu0 %v221
        %v243 = vpop.xlane.xlu0 %242
        %244 = vadd.xlane.f32.xlu0 %v222
        %v245 = vpop.xlane.xlu0 %244
        %246 = vadd.xlane.f32.xlu0 %v223
        %v247 = vpop.xlane.xlu0 %246
        %248 = vadd.xlane.f32.xlu0 %v224
        %v249 = vpop.xlane.xlu0 %248
        %250 = vadd.xlane.f32.xlu0 %v225
        %v251 = vpop.xlane.xlu0 %250
        %252 = vadd.xlane.f32.xlu0 %v226
        %v253 = vpop.xlane.xlu0 %252
        %254 = vadd.xlane.f32.xlu0 %v227
        %v255 = vpop.xlane.xlu0 %254
        %256 = vadd.xlane.f32.xlu0 %v228
        %v257 = vpop.xlane.xlu0 %256
        %258 = vadd.xlane.f32.xlu0 %v229
        %v259 = vpop.xlane.xlu0 %258
        %260 = vadd.xlane.f32.xlu0 %v230
        %v261 = vpop.xlane.xlu0 %260
        %262 = vadd.xlane.f32.xlu0 %v231
        %v263 = vpop.xlane.xlu0 %262
        %v264 = vstv %s209
        %v265 = vadd.f32 %v233, %v264
        %v266 = vadd.f32 %v235, %v264
        %v267 = vadd.f32 %v237, %v264
        %v268 = vadd.f32 %v239, %v264
        %v269 = vadd.f32 %v241, %v264
        %v270 = vadd.f32 %v243, %v264
        %v271 = vadd.f32 %v245, %v264
        %v272 = vadd.f32 %v247, %v264
        %v273 = vadd.f32 %v249, %v264
        %v274 = vadd.f32 %v251, %v264
        %v275 = vadd.f32 %v253, %v264
        %v276 = vadd.f32 %v255, %v264
        %v277 = vadd.f32 %v257, %v264
        %v278 = vadd.f32 %v259, %v264
        %v279 = vadd.f32 %v261, %v264
        %v280 = vadd.f32 %v263, %v264
        %v281 = vtanh.pop %v265
        %v282 = vtanh.pop %v266
        %v283 = vtanh.pop %v267
        %v284 = vtanh.pop %v268
        %v285 = vtanh.pop %v269
        %v286 = vtanh.pop %v270
        %v287 = vtanh.pop %v271
        %v288 = vtanh.pop %v272
        %v289 = vtanh.pop %v273
        %v290 = vtanh.pop %v274
        %v291 = vtanh.pop %v275
        %v292 = vtanh.pop %v276
        %v293 = vtanh.pop %v277
        %v294 = vtanh.pop %v278
        %v295 = vtanh.pop %v279
        %v296 = vtanh.pop %v280
        %v313 = vlaneseq
        %v314 = vand.u32 %v313, 127
        %v315 = vlaneseq
        %v316 = vshrl.u32 %v315, 7
        %v317 = vsub.s32 %v314, %v316
        %v318 = vrot.slane %v281, %v317
        %v319 = vadd.s32 %v314, 4294967288
        %v320 = vlaneseq
        %v321 = vshrl.u32 %v320, 7
        %v322 = vsub.s32 %v319, %v321
        %v323 = vrot.slane %v282, %v322
        %vm324 = vcmask 130112
        %v325 = vsel %vm324, %v323, %v318
        %v326 = vlaneseq
        %v327 = vshrl.u32 %v326, 7
        %v328 = vsub.s32 %v314, %v327
        %v329 = vrot.slane %v283, %v328
        %v330 = vlaneseq
        %v331 = vshrl.u32 %v330, 7
        %v332 = vsub.s32 %v319, %v331
        %v333 = vrot.slane %v284, %v332
        %v334 = vsel %vm324, %v333, %v329
        %v335 = vlaneseq
        %v336 = vshrl.u32 %v335, 7
        %v337 = vsub.s32 %v314, %v336
        %v338 = vrot.slane %v285, %v337
        %v339 = vlaneseq
        %v340 = vshrl.u32 %v339, 7
        %v341 = vsub.s32 %v319, %v340
        %v342 = vrot.slane %v286, %v341
        %v343 = vsel %vm324, %v342, %v338
        %v344 = vlaneseq
        %v345 = vshrl.u32 %v344, 7
        %v346 = vsub.s32 %v314, %v345
        %v347 = vrot.slane %v287, %v346
        %v348 = vlaneseq
        %v349 = vshrl.u32 %v348, 7
        %v350 = vsub.s32 %v319, %v349
        %v351 = vrot.slane %v288, %v350
        %v352 = vsel %vm324, %v351, %v347
        %v353 = vlaneseq
        %v354 = vshrl.u32 %v353, 7
        %v355 = vsub.s32 %v314, %v354
        %v356 = vrot.slane %v289, %v355
        %v357 = vlaneseq
        %v358 = vshrl.u32 %v357, 7
        %v359 = vsub.s32 %v319, %v358
        %v360 = vrot.slane %v290, %v359
        %v361 = vsel %vm324, %v360, %v356
        %v362 = vlaneseq
        %v363 = vshrl.u32 %v362, 7
        %v364 = vsub.s32 %v314, %v363
        %v365 = vrot.slane %v291, %v364
        %v366 = vlaneseq
        %v367 = vshrl.u32 %v366, 7
        %v368 = vsub.s32 %v319, %v367
        %v369 = vrot.slane %v292, %v368
        %v370 = vsel %vm324, %v369, %v365
        %v371 = vlaneseq
        %v372 = vshrl.u32 %v371, 7
        %v373 = vsub.s32 %v314, %v372
        %v374 = vrot.slane %v293, %v373
        %v375 = vlaneseq
        %v376 = vshrl.u32 %v375, 7
        %v377 = vsub.s32 %v319, %v376
        %v378 = vrot.slane %v294, %v377
        %v379 = vsel %vm324, %v378, %v374
        %v380 = vlaneseq
        %v381 = vshrl.u32 %v380, 7
        %v382 = vsub.s32 %v314, %v381
        %v383 = vrot.slane %v295, %v382
        %v384 = vlaneseq
        %v385 = vshrl.u32 %v384, 7
        %v386 = vsub.s32 %v319, %v385
        %v387 = vrot.slane %v296, %v386
        %v388 = vsel %vm324, %v387, %v383
        %vm389 = vcmask 1041409
        %v390 = vsel %vm389, %v334, %v325
        %vm391 = vcmask 1042434
        %v392 = vsel %vm391, %v343, %v390
        %vm393 = vcmask 1043459
        %v394 = vsel %vm393, %v352, %v392
        %vm395 = vcmask 1044484
        %v396 = vsel %vm395, %v361, %v394
        %vm397 = vcmask 1045509
        %v398 = vsel %vm397, %v370, %v396
        %vm399 = vcmask 1046534
        %v400 = vsel %vm399, %v379, %v398
        %vm401 = vcmask 1047559
        %v402 = vsel %vm401, %v388, %v400
        %vm404 = vcmask 130048
        %v405 = vsel %vm404, %v402, -inf
        %406 = vmax.xlane.f32.xlu0 %v405
        %v407 = vpop.xlane.xlu0 %406
        %v409 = vlaneseq
        %v410 = vshrl.u32 %v409, 7
        %v411 = vsub.s32 0, %v410
        %v412 = vrot.slane %v407, %v411
        %v413 = vlaneseq
        %v414 = vshrl.u32 %v413, 7
        %v415 = vsub.s32 1, %v414
        %v416 = vrot.slane %v407, %v415
        %v417 = vlaneseq
        %v418 = vshrl.u32 %v417, 7
        %v419 = vsub.s32 2, %v418
        %v420 = vrot.slane %v407, %v419
        %v421 = vlaneseq
        %v422 = vshrl.u32 %v421, 7
        %v423 = vsub.s32 3, %v422
        %v424 = vrot.slane %v407, %v423
        %v425 = vlaneseq
        %v426 = vshrl.u32 %v425, 7
        %v427 = vsub.s32 4, %v426
        %v428 = vrot.slane %v407, %v427
        %v429 = vlaneseq
        %v430 = vshrl.u32 %v429, 7
        %v431 = vsub.s32 5, %v430
        %v432 = vrot.slane %v407, %v431
        %v433 = vlaneseq
        %v434 = vshrl.u32 %v433, 7
        %v435 = vsub.s32 6, %v434
        %v436 = vrot.slane %v407, %v435
        %v437 = vlaneseq
        %v438 = vshrl.u32 %v437, 7
        %v439 = vsub.s32 7, %v438
        %v440 = vrot.slane %v407, %v439
        %v449 = vsub.f32 %v281, %v412
        %v450 = vsub.f32 %v282, %v412
        %v451 = vsub.f32 %v283, %v416
        %v452 = vsub.f32 %v284, %v416
        %v453 = vsub.f32 %v285, %v420
        %v454 = vsub.f32 %v286, %v420
        %v455 = vsub.f32 %v287, %v424
        %v456 = vsub.f32 %v288, %v424
        %v457 = vsub.f32 %v289, %v428
        %v458 = vsub.f32 %v290, %v428
        %v459 = vsub.f32 %v291, %v432
        %v460 = vsub.f32 %v292, %v432
        %v461 = vsub.f32 %v293, %v436
        %v462 = vsub.f32 %v294, %v436
        %v463 = vsub.f32 %v295, %v440
        %v464 = vsub.f32 %v296, %v440
        %v465 = vmul.f32 %v449, 1.442695
        %v466 = vpow.pop %v465
        %v467 = vmul.f32 %v450, 1.442695
        %v468 = vpow.pop %v467
        %v469 = vmul.f32 %v451, 1.442695
        %v470 = vpow.pop %v469
        %v471 = vmul.f32 %v452, 1.442695
        %v472 = vpow.pop %v471
        %v473 = vmul.f32 %v453, 1.442695
        %v474 = vpow.pop %v473
        %v475 = vmul.f32 %v454, 1.442695
        %v476 = vpow.pop %v475
        %v477 = vmul.f32 %v455, 1.442695
        %v478 = vpow.pop %v477
        %v479 = vmul.f32 %v456, 1.442695
        %v480 = vpow.pop %v479
        %v481 = vmul.f32 %v457, 1.442695
        %v482 = vpow.pop %v481
        %v483 = vmul.f32 %v458, 1.442695
        %v484 = vpow.pop %v483
        %v485 = vmul.f32 %v459, 1.442695
        %v486 = vpow.pop %v485
        %v487 = vmul.f32 %v460, 1.442695
        %v488 = vpow.pop %v487
        %v489 = vmul.f32 %v461, 1.442695
        %v490 = vpow.pop %v489
        %v491 = vmul.f32 %v462, 1.442695
        %v492 = vpow.pop %v491
        %v493 = vmul.f32 %v463, 1.442695
        %v494 = vpow.pop %v493
        %v495 = vmul.f32 %v464, 1.442695
        %v496 = vpow.pop %v495
        %513 = vset.pattern.permute.xlu0 0
        %514 = vperm.xlu0 %513, %v466
        %v515 = vpop.permute.xlu0 %514
        %516 = vset.pattern.permute.xlu0 0
        %517 = vperm.xlu0 %516, %v468
        %v518 = vpop.permute.xlu0 %517
        %519 = vset.pattern.permute.xlu0 0
        %520 = vperm.xlu0 %519, %v470
        %v521 = vpop.permute.xlu0 %520
        %522 = vset.pattern.permute.xlu0 0
        %523 = vperm.xlu0 %522, %v472
        %v524 = vpop.permute.xlu0 %523
        %525 = vset.pattern.permute.xlu0 0
        %526 = vperm.xlu0 %525, %v474
        %v527 = vpop.permute.xlu0 %526
        %528 = vset.pattern.permute.xlu0 0
        %529 = vperm.xlu0 %528, %v476
        %v530 = vpop.permute.xlu0 %529
        %531 = vset.pattern.permute.xlu0 0
        %532 = vperm.xlu0 %531, %v478
        %v533 = vpop.permute.xlu0 %532
        %534 = vset.pattern.permute.xlu0 0
        %535 = vperm.xlu0 %534, %v480
        %v536 = vpop.permute.xlu0 %535
        %537 = vset.pattern.permute.xlu0 0
        %538 = vperm.xlu0 %537, %v482
        %v539 = vpop.permute.xlu0 %538
        %540 = vset.pattern.permute.xlu0 0
        %541 = vperm.xlu0 %540, %v484
        %v542 = vpop.permute.xlu0 %541
        %543 = vset.pattern.permute.xlu0 0
        %544 = vperm.xlu0 %543, %v486
        %v545 = vpop.permute.xlu0 %544
        %546 = vset.pattern.permute.xlu0 0
        %547 = vperm.xlu0 %546, %v488
        %v548 = vpop.permute.xlu0 %547
        %549 = vset.pattern.permute.xlu0 0
        %550 = vperm.xlu0 %549, %v490
        %v551 = vpop.permute.xlu0 %550
        %552 = vset.pattern.permute.xlu0 0
        %553 = vperm.xlu0 %552, %v492
        %v554 = vpop.permute.xlu0 %553
        %555 = vset.pattern.permute.xlu0 0
        %556 = vperm.xlu0 %555, %v494
        %v557 = vpop.permute.xlu0 %556
        %558 = vset.pattern.permute.xlu0 0
        %559 = vperm.xlu0 %558, %v496
        %v560 = vpop.permute.xlu0 %559
        %v561 = vlaneseq
        %v562 = vshrl.u32 %v561, 7
        %v563 = vsub.s32 %v314, %v562
        %v564 = vrot.slane %v515, %v563
        %v565 = vlaneseq
        %v566 = vshrl.u32 %v565, 7
        %v567 = vsub.s32 %v319, %v566
        %v568 = vrot.slane %v518, %v567
        %v569 = vsel %vm324, %v568, %v564
        %v570 = vlaneseq
        %v571 = vshrl.u32 %v570, 7
        %v572 = vsub.s32 %v314, %v571
        %v573 = vrot.slane %v521, %v572
        %v574 = vlaneseq
        %v575 = vshrl.u32 %v574, 7
        %v576 = vsub.s32 %v319, %v575
        %v577 = vrot.slane %v524, %v576
        %v578 = vsel %vm324, %v577, %v573
        %v579 = vlaneseq
        %v580 = vshrl.u32 %v579, 7
        %v581 = vsub.s32 %v314, %v580
        %v582 = vrot.slane %v527, %v581
        %v583 = vlaneseq
        %v584 = vshrl.u32 %v583, 7
        %v585 = vsub.s32 %v319, %v584
        %v586 = vrot.slane %v530, %v585
        %v587 = vsel %vm324, %v586, %v582
        %v588 = vlaneseq
        %v589 = vshrl.u32 %v588, 7
        %v590 = vsub.s32 %v314, %v589
        %v591 = vrot.slane %v533, %v590
        %v592 = vlaneseq
        %v593 = vshrl.u32 %v592, 7
        %v594 = vsub.s32 %v319, %v593
        %v595 = vrot.slane %v536, %v594
        %v596 = vsel %vm324, %v595, %v591
        %v597 = vlaneseq
        %v598 = vshrl.u32 %v597, 7
        %v599 = vsub.s32 %v314, %v598
        %v600 = vrot.slane %v539, %v599
        %v601 = vlaneseq
        %v602 = vshrl.u32 %v601, 7
        %v603 = vsub.s32 %v319, %v602
        %v604 = vrot.slane %v542, %v603
        %v605 = vsel %vm324, %v604, %v600
        %v606 = vlaneseq
        %v607 = vshrl.u32 %v606, 7
        %v608 = vsub.s32 %v314, %v607
        %v609 = vrot.slane %v545, %v608
        %v610 = vlaneseq
        %v611 = vshrl.u32 %v610, 7
        %v612 = vsub.s32 %v319, %v611
        %v613 = vrot.slane %v548, %v612
        %v614 = vsel %vm324, %v613, %v609
        %v615 = vlaneseq
        %v616 = vshrl.u32 %v615, 7
        %v617 = vsub.s32 %v314, %v616
        %v618 = vrot.slane %v551, %v617
        %v619 = vlaneseq
        %v620 = vshrl.u32 %v619, 7
        %v621 = vsub.s32 %v319, %v620
        %v622 = vrot.slane %v554, %v621
        %v623 = vsel %vm324, %v622, %v618
        %v624 = vlaneseq
        %v625 = vshrl.u32 %v624, 7
        %v626 = vsub.s32 %v314, %v625
        %v627 = vrot.slane %v557, %v626
        %v628 = vlaneseq
        %v629 = vshrl.u32 %v628, 7
        %v630 = vsub.s32 %v319, %v629
        %v631 = vrot.slane %v560, %v630
        %v632 = vsel %vm324, %v631, %v627
        %v633 = vsel %vm389, %v578, %v569
        %v634 = vsel %vm391, %v587, %v633
        %v635 = vsel %vm393, %v596, %v634
        %v636 = vsel %vm395, %v605, %v635
        %v637 = vsel %vm397, %v614, %v636
        %v638 = vsel %vm399, %v623, %v637
        %v639 = vsel %vm401, %v632, %v638
        %v641 = vsel %vm404, %v639, 0.0
        %642 = vadd.xlane.f32.xlu0 %v641
        %v643 = vpop.xlane.xlu0 %642
        %v660 = vmul.f32 %v515, %v192
        %v661 = vmul.f32 %v518, %v193
        %v662 = vmul.f32 %v521, %v194
        %v663 = vmul.f32 %v524, %v195
        %v664 = vmul.f32 %v527, %v196
        %v665 = vmul.f32 %v530, %v197
        %v666 = vmul.f32 %v533, %v198
        %v667 = vmul.f32 %v536, %v199
        %v668 = vmul.f32 %v539, %v200
        %v669 = vmul.f32 %v542, %v201
        %v670 = vmul.f32 %v545, %v202
        %v671 = vmul.f32 %v548, %v203
        %v672 = vmul.f32 %v551, %v204
        %v673 = vmul.f32 %v554, %v205
        %v674 = vmul.f32 %v557, %v206
        %v675 = vmul.f32 %v560, %v207
        %v676 = vadd.f32 %v660, %v661
        %v677 = vrot.slane %v676, 4
        %v678 = vadd.f32 %v676, %v677
        %v679 = vrot.slane %v678, 2
        %v680 = vadd.f32 %v678, %v679
        %v681 = vrot.slane %v680, 1
        %v682 = vadd.f32 %v680, %v681
        %v683 = vadd.f32 %v662, %v663
        %v684 = vrot.slane %v683, 4
        %v685 = vadd.f32 %v683, %v684
        %v686 = vrot.slane %v685, 2
        %v687 = vadd.f32 %v685, %v686
        %v688 = vrot.slane %v687, 1
        %v689 = vadd.f32 %v687, %v688
        %v690 = vadd.f32 %v664, %v665
        %v691 = vrot.slane %v690, 4
        %v692 = vadd.f32 %v690, %v691
        %v693 = vrot.slane %v692, 2
        %v694 = vadd.f32 %v692, %v693
        %v695 = vrot.slane %v694, 1
        %v696 = vadd.f32 %v694, %v695
        %v697 = vadd.f32 %v666, %v667
        %v698 = vrot.slane %v697, 4
        %v699 = vadd.f32 %v697, %v698
        %v700 = vrot.slane %v699, 2
        %v701 = vadd.f32 %v699, %v700
        %v702 = vrot.slane %v701, 1
        %v703 = vadd.f32 %v701, %v702
        %v704 = vadd.f32 %v668, %v669
        %v705 = vrot.slane %v704, 4
        %v706 = vadd.f32 %v704, %v705
        %v707 = vrot.slane %v706, 2
        %v708 = vadd.f32 %v706, %v707
        %v709 = vrot.slane %v708, 1
        %v710 = vadd.f32 %v708, %v709
        %v711 = vadd.f32 %v670, %v671
        %v712 = vrot.slane %v711, 4
        %v713 = vadd.f32 %v711, %v712
        %v714 = vrot.slane %v713, 2
        %v715 = vadd.f32 %v713, %v714
        %v716 = vrot.slane %v715, 1
        %v717 = vadd.f32 %v715, %v716
        %v718 = vadd.f32 %v672, %v673
        %v719 = vrot.slane %v718, 4
        %v720 = vadd.f32 %v718, %v719
        %v721 = vrot.slane %v720, 2
        %v722 = vadd.f32 %v720, %v721
        %v723 = vrot.slane %v722, 1
        %v724 = vadd.f32 %v722, %v723
        %v725 = vadd.f32 %v674, %v675
        %v726 = vrot.slane %v725, 4
        %v727 = vadd.f32 %v725, %v726
        %v728 = vrot.slane %v727, 2
        %v729 = vadd.f32 %v727, %v728
        %v730 = vrot.slane %v729, 1
        %v731 = vadd.f32 %v729, %v730
        %v733 = vrot.slane %v643, 1
        %v734 = vrot.slane %v643, 2
        %v735 = vrot.slane %v643, 3
        %v736 = vrot.slane %v643, 4
        %v737 = vrot.slane %v643, 5
        %v738 = vrot.slane %v643, 6
        %v739 = vrot.slane %v643, 7
        %v748 = vrcp.pop %v643
        %v749 = vmul.f32 %v682, %v748
        %v750 = vrcp.pop %v733
        %v751 = vmul.f32 %v689, %v750
        %v752 = vrcp.pop %v734
        %v753 = vmul.f32 %v696, %v752
        %v754 = vrcp.pop %v735
        %v755 = vmul.f32 %v703, %v754
        %v756 = vrcp.pop %v736
        %v757 = vmul.f32 %v710, %v756
        %v758 = vrcp.pop %v737
        %v759 = vmul.f32 %v717, %v758
        %v760 = vrcp.pop %v738
        %v761 = vmul.f32 %v724, %v760
        %v762 = vrcp.pop %v739
        %v763 = vmul.f32 %v731, %v762
        %v772 = vrot.slane %v751, 7
        %v773 = vsel %vm389, %v772, %v749
        %v774 = vrot.slane %v753, 6
        %v775 = vsel %vm391, %v774, %v773
        %v776 = vrot.slane %v755, 5
        %v777 = vsel %vm393, %v776, %v775
        %v778 = vrot.slane %v757, 4
        %v779 = vsel %vm395, %v778, %v777
        %v780 = vrot.slane %v759, 3
        %v781 = vsel %vm397, %v780, %v779
        %v782 = vrot.slane %v761, 2
        %v783 = vsel %vm399, %v782, %v781
        %v784 = vrot.slane %v763, 1
        %v785 = vsel %vm401, %v784, %v783
        %787 = vst [vmem:[%s190] sm:$0xff] %v785
        %s788 = sand.u32 %s97, 1
        %s789 = scalar_lea.sflag [#allocation5], %s788
        %s790 = sand.u32 %s97, 1
        %s791 = smul.addr %s790, 8
        %s792 = scalar_lea.vmem [#allocation6], %s791
        // Predicated region
        $region37: #{tpu_custom_call.1} parent=31 // pred_check
          %p793 = pneg %p107
        $region38: #{tpu_custom_call.1} parent=31 // pred_check_branch
          %795 = sbr.rel (%p793) target = $region40
        $region39: #{tpu_custom_call.1} parent=31 // pred_region
          %s797 = ssub.s32 128, 128
          %798 = vsyncadd %s789, %s797
          %s799 = smul.addr %s21, 128
          %s800 = scalar_lea.hbm %s3, %s799
          %s802 = sshll.u32 %s792, 4
          %s803 = int_to_ptr.vmem [resolvable:$true] %s802
          %805 = dma.vmem_to_hbm [thread:$0]  %s803, 128, %s800, %s789
        $region40: #{tpu_custom_call.1} parent=31 // pred_fallthru
          _
      $region32: #{tpu_custom_call.1} parent=5 // pred_fallthru
        _
      %p806 = scmp.le.s32.totalorder 2, %s16
      // Predicated region
      $region41: #{tpu_custom_call.1} parent=5 // pred_check
        %p807 = pneg %p806
      $region42: #{tpu_custom_call.1} parent=5 // pred_check_branch
        %809 = sbr.rel (%p807) target = $region44
      $region43: #{tpu_custom_call.1} parent=5 // pred_region
        %s810 = ssub.s32 %s16, 2
        // Predicated region
        $region45: #{tpu_custom_call.1} parent=43 // pred_check
          %p811 = pneg %p113
        $region46: #{tpu_custom_call.1} parent=43 // pred_check_branch
          %813 = sbr.rel (%p811) target = $region48
        $region47: #{tpu_custom_call.1} parent=43 // pred_region
          %s814 = sand.u32 %s98, 1
          %s815 = scalar_lea.sflag [#allocation5], %s814
          %s816 = sand.u32 %s98, 1
          %s817 = smul.addr %s816, 8
          %s818 = scalar_lea.vmem [#allocation6], %s817
          %819 = dma.done %s815, 128
        $region48: #{tpu_custom_call.1} parent=43 // pred_fallthru
          _
      $region44: #{tpu_custom_call.1} parent=5 // pred_fallthru
        _
    $region6: #{tpu_custom_call.1} parent=1 // loop_footer
      %s20 = sadd.s32 1, %s16
    $region7: #{tpu_custom_call.1} parent=1 // loop_footer_branch
      %15 = sbr.rel target = $region3
    $region8: #{tpu_custom_call.1} parent=1 // loop_exit
      _
    %820 = vsyncpa [#allocation4], 1
    %s821 = scalar_lea.sflag [#allocation4], 1
    %822 = vsyncpa %s821, 1
    %823 = vsyncpa [#allocation5], 1
    %s824 = scalar_lea.sflag [#allocation5], 1
    %825 = vsyncpa %s824, 1

</llo_original>
